<compile_context>
chip_gen: v5e
topology: v5e:2x2
jax: 0.10.0
libtpu: 0.0.40
codegen_flags: <defaults>
</compile_context>

<pallas_src>
import functools
import math

import jax
import jax.numpy as jnp
from jax import lax
from jax.experimental import pallas as pl
from jax.experimental.pallas import tpu as pltpu

LN_EPS = 1e-12


def _pick_row_tile(n):
    """Largest row-tile (multiple of 8 when possible) that divides n."""
    for c in (512, 256, 128, 64, 32, 16, 8):
        if n % c == 0:
            return c
    return n


def _erf_approx(x):
    # Abramowitz & Stegun 7.1.26 (max abs error ~1.5e-7): uses only exp/mul/add,
    # which lower cleanly in Mosaic; matches torch.erf to f32-level accuracy.
    a1, a2, a3, a4, a5 = 0.254829592, -0.284496736, 1.421413741, -1.453152027, 1.061405429
    p = 0.3275911
    sgn = jnp.where(x >= 0.0, 1.0, -1.0)
    ax = jnp.abs(x)
    t = 1.0 / (1.0 + p * ax)
    poly = ((((a5 * t + a4) * t + a3) * t + a2) * t + a1) * t
    return sgn * (1.0 - poly * jnp.exp(-ax * ax))


def _gelu(x):
    # gelu(x) = x * 0.5 * (1 + erf(x / sqrt(2)))  (exact-erf BERT gelu)
    return x * 0.5 * (1.0 + _erf_approx(x * (1.0 / math.sqrt(2.0))))


# ----------------------------------------------------------------------------
# Kernel 1: linear (+ optional GELU)
# ----------------------------------------------------------------------------
def _linear_kernel(x_ref, w_ref, b_ref, o_ref, *, activation):
    acc = jnp.dot(x_ref[...], w_ref[...], preferred_element_type=jnp.float32)
    acc = acc + b_ref[...]
    if activation == "gelu":
        acc = _gelu(acc)
    o_ref[...] = acc.astype(o_ref.dtype)


def linear_pallas(x2d, w, b, activation=None):
    n, k = x2d.shape
    m = w.shape[1]
    tq = _pick_row_tile(n)
    kern = functools.partial(_linear_kernel, activation=activation)
    return pl.pallas_call(
        kern,
        out_shape=jax.ShapeDtypeStruct((n, m), x2d.dtype),
        grid=(n // tq,),
        in_specs=[
            pl.BlockSpec((tq, k), lambda i: (i, 0)),
            pl.BlockSpec((k, m), lambda i: (0, 0)),   # weight resident
            pl.BlockSpec((1, m), lambda i: (0, 0)),   # bias resident
        ],
        out_specs=pl.BlockSpec((tq, m), lambda i: (i, 0)),
        compiler_params=pltpu.CompilerParams(dimension_semantics=("parallel",)),
    )(x2d, w, b.reshape(1, m))


# ----------------------------------------------------------------------------
# Kernel 2: fused linear + residual add + LayerNorm (BertSelfOutput/BertOutput)
# ----------------------------------------------------------------------------
def _linear_res_ln_kernel(x_ref, w_ref, b_ref, res_ref, g_ref, beta_ref, o_ref):
    acc = jnp.dot(x_ref[...], w_ref[...], preferred_element_type=jnp.float32)
    acc = acc + b_ref[...] + res_ref[...].astype(jnp.float32)
    mu = jnp.mean(acc, axis=-1, keepdims=True)
    xc = acc - mu
    var = jnp.mean(xc * xc, axis=-1, keepdims=True)        # biased variance (BertLayerNorm)
    y = xc * lax.rsqrt(var + LN_EPS) * g_ref[...] + beta_ref[...]
    o_ref[...] = y.astype(o_ref.dtype)


def linear_residual_ln_pallas(x2d, w, b, res2d, gamma, beta):
    n, k = x2d.shape
    m = w.shape[1]
    tq = _pick_row_tile(n)
    return pl.pallas_call(
        _linear_res_ln_kernel,
        out_shape=jax.ShapeDtypeStruct((n, m), x2d.dtype),
        grid=(n // tq,),
        in_specs=[
            pl.BlockSpec((tq, k), lambda i: (i, 0)),
            pl.BlockSpec((k, m), lambda i: (0, 0)),
            pl.BlockSpec((1, m), lambda i: (0, 0)),
            pl.BlockSpec((tq, m), lambda i: (i, 0)),
            pl.BlockSpec((1, m), lambda i: (0, 0)),
            pl.BlockSpec((1, m), lambda i: (0, 0)),
        ],
        out_specs=pl.BlockSpec((tq, m), lambda i: (i, 0)),
        compiler_params=pltpu.CompilerParams(dimension_semantics=("parallel",)),
    )(x2d, w, b.reshape(1, m), res2d, gamma.reshape(1, m), beta.reshape(1, m))


# ----------------------------------------------------------------------------
# Kernel 3: self-attention core per (batch, head)
# ----------------------------------------------------------------------------
def _attention_kernel(q_ref, k_ref, v_ref, mask_ref, scores_ref, ctx_ref, *, scale):
    q = q_ref[0, 0].astype(jnp.float32)          # (S, Dh)
    k = k_ref[0, 0].astype(jnp.float32)          # (S, Dh)
    v = v_ref[0, 0].astype(jnp.float32)          # (S, Dh)
    # scores = Q @ K^T * scale + mask  (rhs-contracted dot avoids explicit transpose)
    s = lax.dot_general(q, k, (((1,), (1,)), ((), ())),
                        preferred_element_type=jnp.float32) * scale
    s = s + mask_ref[0, 0]                       # (1, S) broadcast over query rows
    scores_ref[0, 0] = s.astype(scores_ref.dtype)
    # softmax (dropout is identity in eval mode)
    m = jnp.max(s, axis=-1, keepdims=True)
    p = jnp.exp(s - m)
    p = p / jnp.sum(p, axis=-1, keepdims=True)
    ctx = jnp.dot(p, v, preferred_element_type=jnp.float32)
    ctx_ref[0, 0] = ctx.astype(ctx_ref.dtype)


def attention_pallas(q, k, v, mask, scale):
    # q, k, v: (B, nH, S, Dh); mask: (B, 1, 1, S)
    b, nh, s, dh = q.shape
    kern = functools.partial(_attention_kernel, scale=scale)
    scores, ctx = pl.pallas_call(
        kern,
        out_shape=(jax.ShapeDtypeStruct((b, nh, s, s), jnp.float32),
                   jax.ShapeDtypeStruct((b, nh, s, dh), q.dtype)),
        grid=(b, nh),
        in_specs=[
            pl.BlockSpec((1, 1, s, dh), lambda bi, hi: (bi, hi, 0, 0)),
            pl.BlockSpec((1, 1, s, dh), lambda bi, hi: (bi, hi, 0, 0)),
            pl.BlockSpec((1, 1, s, dh), lambda bi, hi: (bi, hi, 0, 0)),
            pl.BlockSpec((1, 1, 1, s), lambda bi, hi: (bi, 0, 0, 0)),
        ],
        out_specs=(
            pl.BlockSpec((1, 1, s, s), lambda bi, hi: (bi, hi, 0, 0)),
            pl.BlockSpec((1, 1, s, dh), lambda bi, hi: (bi, hi, 0, 0)),
        ),
        compiler_params=pltpu.CompilerParams(
            dimension_semantics=("parallel", "parallel")),
    )(q, k, v, mask)
    return scores, ctx


# ----------------------------------------------------------------------------
# BertLayer / BertEncoder forward (eval mode, full precision)
# ----------------------------------------------------------------------------
def bert_layer(hidden, mask, p, num_heads):
    B, S, H = hidden.shape
    dh = H // num_heads
    x2d = hidden.reshape(B * S, H)

    q = linear_pallas(x2d, p["wq"], p["bq"])
    k = linear_pallas(x2d, p["wk"], p["bk"])
    v = linear_pallas(x2d, p["wv"], p["bv"])

    def split_heads(t):
        return t.reshape(B, S, num_heads, dh).transpose(0, 2, 1, 3)

    scores, ctx = attention_pallas(split_heads(q), split_heads(k), split_heads(v),
                                   mask, 1.0 / math.sqrt(dh))
    ctx2d = ctx.transpose(0, 2, 1, 3).reshape(B * S, H)

    # BertSelfOutput: dense + residual + LayerNorm (fused)
    attn_out = linear_residual_ln_pallas(ctx2d, p["wo"], p["bo"],
                                         x2d, p["ln1_g"], p["ln1_b"])
    # BertIntermediate: dense + gelu
    inter = linear_pallas(attn_out, p["wi"], p["bi"], activation="gelu")
    # BertOutput: dense + residual + LayerNorm (fused)
    out = linear_residual_ln_pallas(inter, p["wo2"], p["bo2"],
                                    attn_out, p["ln2_g"], p["ln2_b"])
    return out.reshape(B, S, H), scores


def bert_encoder(hidden, mask, layer_params, num_heads):
    all_layers = [hidden]
    all_atts = []
    for p in layer_params:
        hidden, att = bert_layer(hidden, mask, p, num_heads)
        all_layers.append(hidden)
        all_atts.append(att)
    return all_layers, all_atts
    # TODO(synk): sub-32-bit QuantizeLinear / act_quant_fn / LearnableBias paths of the
    # quantized BERT config are not implemented (full-precision forward only).


# ----------------------------------------------------------------------------
# Pure-JAX reference
# ----------------------------------------------------------------------------
def _reference_encoder(hidden, mask, layer_params, num_heads):
    def ln(x, g, b):
        mu = jnp.mean(x, -1, keepdims=True)
        var = jnp.mean((x - mu) ** 2, -1, keepdims=True)
        return (x - mu) / jnp.sqrt(var + LN_EPS) * g + b

    def gelu_exact(x):
        return x * 0.5 * (1.0 + lax.erf(x / math.sqrt(2.0)))

    B, S, H = hidden.shape
    dh = H // num_heads
    all_layers = [hidden]
    all_atts = []
    for p in layer_params:
        x = hidden
        q = x @ p["wq"] + p["bq"]
        k = x @ p["wk"] + p["bk"]
        v = x @ p["wv"] + p["bv"]

        def split(t):
            return t.reshape(B, S, num_heads, dh).transpose(0, 2, 1, 3)

        qh, kh, vh = split(q), split(k), split(v)
        s = jnp.einsum("bhqd,bhkd->bhqk", qh, kh) / math.sqrt(dh) + mask
        probs = jax.nn.softmax(s, axis=-1)
        ctx = jnp.einsum("bhqk,bhkd->bhqd", probs, vh)
        ctx = ctx.transpose(0, 2, 1, 3).reshape(B, S, H)
        attn_out = ln(ctx @ p["wo"] + p["bo"] + x, p["ln1_g"], p["ln1_b"])
        inter = gelu_exact(attn_out @ p["wi"] + p["bi"])
        hidden = ln(inter @ p["wo2"] + p["bo2"] + attn_out, p["ln2_g"], p["ln2_b"])
        all_layers.append(hidden)
        all_atts.append(s)
    return all_layers, all_atts


if __name__ == "__main__":
    # Small config: batch=2, seq=16, hidden=32, heads=2, intermediate=64, layers=2
    B, S, H = 2, 16, 32
    NH, I, L = 2, 64, 2

    key = jax.random.PRNGKey(0)

    def make_layer_params(k):
        ks = jax.random.split(k, 12)
        std = 0.05
        return {
            "wq": std * jax.random.normal(ks[0], (H, H), jnp.float32),
            "bq": std * jax.random.normal(ks[1], (H,), jnp.float32),
            "wk": std * jax.random.normal(ks[2], (H, H), jnp.float32),
            "bk": std * jax.random.normal(ks[3], (H,), jnp.float32),
            "wv": std * jax.random.normal(ks[4], (H, H), jnp.float32),
            "bv": std * jax.random.normal(ks[5], (H,), jnp.float32),
            "wo": std * jax.random.normal(ks[6], (H, H), jnp.float32),
            "bo": std * jax.random.normal(ks[7], (H,), jnp.float32),
            "wi": std * jax.random.normal(ks[8], (H, I), jnp.float32),
            "bi": std * jax.random.normal(ks[9], (I,), jnp.float32),
            "wo2": std * jax.random.normal(ks[10], (I, H), jnp.float32),
            "bo2": std * jax.random.normal(ks[11], (H,), jnp.float32),
            "ln1_g": jnp.ones((H,), jnp.float32),
            "ln1_b": jnp.zeros((H,), jnp.float32),
            "ln2_g": jnp.ones((H,), jnp.float32),
            "ln2_b": jnp.zeros((H,), jnp.float32),
        }

    key, k_h, k_m, *k_layers = jax.random.split(key, 3 + L)
    layer_params = [make_layer_params(k) for k in k_layers]

    hidden = jax.random.normal(k_h, (B, S, H), jnp.float32)
    # Standard BERT extended attention mask: (B, 1, 1, S), 0 for keep, -10000 masked.
    keep = jnp.ones((B, S), jnp.float32).at[1, S - 4:].set(0.0)
    attn_mask = ((1.0 - keep) * -10000.0).reshape(B, 1, 1, S)

    layers, atts = bert_encoder(hidden, attn_mask, layer_params, NH)
    layers = [jax.block_until_ready(x) for x in layers]
    atts = [jax.block_until_ready(a) for a in atts]

    ref_layers, ref_atts = _reference_encoder(hidden, attn_mask, layer_params, NH)

    assert len(layers) == L + 1 and len(atts) == L
    for got, want in zip(layers, ref_layers):
        assert got.shape == (B, S, H)
        assert jnp.allclose(got, want, atol=2e-2, rtol=2e-2), "layer output mismatch"
    for got, want in zip(atts, ref_atts):
        assert got.shape == (B, NH, S, S)
        assert jnp.allclose(got, want, atol=2e-2, rtol=2e-2), "attention scores mismatch"

    print("KERNEL_OK")
</pallas_src>

<mosaic_0001>
module attributes {stable_mosaic.version = 11 : i64} {
  func.func @_linear_kernel(%arg0: i32, %arg1: memref<32x32xf32, #tpu.memory_space<vmem>>, %arg2: memref<32x32xf32, #tpu.memory_space<vmem>>, %arg3: memref<1x32xf32, #tpu.memory_space<vmem>>, %arg4: memref<32x32xf32, #tpu.memory_space<vmem>>) attributes {dimension_semantics = [#tpu.dimension_semantics<parallel>], iteration_bounds = array<i64: 1>, scalar_prefetch = 0 : i64, scratch_operands = 0 : i64, tpu.core_type = #tpu.core_type<tc>, window_params = [{transform_indices = @transform_0, window_bounds = array<i64: 32, 32>}, {pipeline_mode = #tpu.pipeline_mode<synchronous>, transform_indices = @transform_1, window_bounds = array<i64: 32, 32>}, {pipeline_mode = #tpu.pipeline_mode<synchronous>, transform_indices = @transform_2, window_bounds = array<i64: 1, 32>}, {transform_indices = @transform_3, window_bounds = array<i64: 32, 32>}]} {
    %c0 = arith.constant 0 : index
    %c0_0 = arith.constant 0 : index
    %0 = vector.load %arg1[%c0, %c0_0] : memref<32x32xf32, #tpu.memory_space<vmem>>, vector<32x32xf32>
    %c0_1 = arith.constant 0 : index
    %c0_2 = arith.constant 0 : index
    %1 = vector.load %arg2[%c0_1, %c0_2] : memref<32x32xf32, #tpu.memory_space<vmem>>, vector<32x32xf32>
    %cst = arith.constant dense<0.000000e+00> : vector<32x32xf32>
    %2 = tpu.matmul %0, %1, %cst {dimension_numbers = #tpu.dot_dimension_numbers<[1], [0], [0], [1], [0, 0, 1, 1], [], []>} : vector<32x32xf32>, vector<32x32xf32>, vector<32x32xf32> -> vector<32x32xf32>
    %c0_3 = arith.constant 0 : index
    %c0_4 = arith.constant 0 : index
    %3 = vector.load %arg3[%c0_3, %c0_4] : memref<1x32xf32, #tpu.memory_space<vmem>>, vector<1x32xf32>
    %4 = vector.broadcast %3 : vector<1x32xf32> to vector<32x32xf32>
    %5 = arith.addf %2, %4 : vector<32x32xf32>
    %c0_5 = arith.constant 0 : index
    %c0_6 = arith.constant 0 : index
    %6 = vector.load %arg4[%c0_5, %c0_6] : memref<32x32xf32, #tpu.memory_space<vmem>>, vector<32x32xf32>
    tpu.vector_store %arg4[%c0_5, %c0_6], %5 {strides = array<i32>} : memref<32x32xf32, #tpu.memory_space<vmem>>, vector<32x32xf32>,
    return
  }
  func.func @transform_0(%arg0: i32) -> (i32, i32) {
    %c0_i32 = arith.constant 0 : i32
    %c0_i32_0 = arith.constant 0 : i32
    return %arg0, %c0_i32 : i32, i32
  }
  func.func @transform_1(%arg0: i32) -> (i32, i32) {
    %c0_i32 = arith.constant 0 : i32
    %c0_i32_0 = arith.constant 0 : i32
    %c0_i32_1 = arith.constant 0 : i32
    return %c0_i32, %c0_i32_0 : i32, i32
  }
  func.func @transform_2(%arg0: i32) -> (i32, i32) {
    %c0_i32 = arith.constant 0 : i32
    %c0_i32_0 = arith.constant 0 : i32
    %c0_i32_1 = arith.constant 0 : i32
    return %c0_i32, %c0_i32_0 : i32, i32
  }
  func.func @transform_3(%arg0: i32) -> (i32, i32) {
    %c0_i32 = arith.constant 0 : i32
    %c0_i32_0 = arith.constant 0 : i32
    return %arg0, %c0_i32 : i32, i32
  }
}

</mosaic_0001>

<llo_original>
// kernel: tpu_custom_call.1
$region0: #{tpu_custom_call.1}
  #allocation0 [shape = 'u32[]', space=smem, size = 0x4, offset = 0x4, fixed_abs, tag = 'smem constant byte address 0x4 - core index']
  #allocation1 [shape = 'u32[72,128]{1,0:T(1,128)}', space=vmem, size = 0x9000, scoped, tag = 'internal scratch']
  %s0 = inlined_call_operand.hbm [shape: f32[32,32], index: 0, kind: input, shape index: {}]
  %s1 = inlined_call_operand.hbm [shape: f32[32,32], index: 1, kind: input, shape index: {}]
  %s2 = inlined_call_operand.vmem [shape: f32[1,32], index: 2, kind: input, shape index: {}]
  %s3 = inlined_call_operand.hbm [shape: f32[32,32], index: 3, kind: output, shape index: {}]
  %s4 = sld [smem:[#allocation0]]
  $region30: #{tpu_custom_call.1} parent=0
    _
  %s6 = ssub.s32 1, %s4
  %s7 = scalar_select 0, %s6, %s4
  $region1: #{tpu_custom_call.1} parent=0
    #allocation2 [shape = 'u8[16384]{0}', space=vmem, size = 0x4000, scoped, tag = 'input window, operand 0, single buffered']
    #allocation3 [shape = 's32[1]{0}', space=sflag, size = 0x4, scoped, tag = 'scoped memory for tpu_custom_call.1']
    #allocation4 [shape = 's32[1]{0}', space=sflag, size = 0x4, scoped, tag = 'scoped memory for tpu_custom_call.1']
    #allocation5 [shape = 'u8[16384]{0}', space=vmem, size = 0x4000, scoped, tag = 'input window, operand 1, single buffered']
    #allocation6 [shape = 's32[1]{0}', space=sflag, size = 0x4, scoped, tag = 'scoped memory for tpu_custom_call.1']
    #allocation7 [shape = 'u8[16384]{0}', space=vmem, size = 0x4000, scoped, tag = 'output window, operand 0, single buffered']
    %8 = vsyncpa [#allocation3], 0
    %9 = vsyncpa [#allocation6], 0
    %10 = vsyncpa [#allocation4], 0
    // Predicated region
    $region2: #{tpu_custom_call.1} parent=1 // pred_check
      _
    $region3: #{tpu_custom_call.1} parent=1 // pred_check_branch
      %12 = sbr.rel (0) target = $region5
    $region4: #{tpu_custom_call.1} parent=1 // pred_region
      %14 = vsyncadd [#allocation3], 0
      %s15 = sshll.u32 %s0, 4
      %s16 = int_to_ptr.hbm [resolvable:$true] %s15
      %s17 = sshll.u32 [#allocation2], 4
      %s18 = int_to_ptr.vmem [resolvable:$true] %s17
      %23 = dma.hbm_to_vmem [thread:$0]  %s16, 512, %s18, [#allocation3], 128, 128, 8
    $region5: #{tpu_custom_call.1} parent=1 // pred_fallthru
      _
    // Predicated region
    $region6: #{tpu_custom_call.1} parent=1 // pred_check
      _
    $region7: #{tpu_custom_call.1} parent=1 // pred_check_branch
      %25 = sbr.rel (0) target = $region9
    $region8: #{tpu_custom_call.1} parent=1 // pred_region
      %27 = vsyncadd [#allocation6], 0
      %s28 = sshll.u32 %s1, 4
      %s29 = int_to_ptr.hbm [resolvable:$true] %s28
      %s30 = sshll.u32 [#allocation5], 4
      %s31 = int_to_ptr.vmem [resolvable:$true] %s30
      %36 = dma.hbm_to_vmem [thread:$0]  %s29, 512, %s31, [#allocation6], 128, 128, 8
    $region9: #{tpu_custom_call.1} parent=1 // pred_fallthru
      _
    // Predicated region
    $region10: #{tpu_custom_call.1} parent=1 // pred_check
      _
    $region11: #{tpu_custom_call.1} parent=1 // pred_check_branch
      %38 = sbr.rel (0) target = $region13
    $region12: #{tpu_custom_call.1} parent=1 // pred_region
      _
    $region13: #{tpu_custom_call.1} parent=1 // pred_fallthru
      _
    // Predicated region
    $region14: #{tpu_custom_call.1} parent=1 // pred_check
      _
    $region15: #{tpu_custom_call.1} parent=1 // pred_check_branch
      %40 = sbr.rel (0) target = $region17
    $region16: #{tpu_custom_call.1} parent=1 // pred_region
      %42 = dma.done [#allocation3], 512
    $region17: #{tpu_custom_call.1} parent=1 // pred_fallthru
      _
    // Predicated region
    $region18: #{tpu_custom_call.1} parent=1 // pred_check
      _
    $region19: #{tpu_custom_call.1} parent=1 // pred_check_branch
      %44 = sbr.rel (0) target = $region21
    $region20: #{tpu_custom_call.1} parent=1 // pred_region
      %46 = dma.done [#allocation6], 512
    $region21: #{tpu_custom_call.1} parent=1 // pred_fallthru
      _
    %v47 = vld [vmem:[#allocation2] sm:$0xff]
    %v48 = vld [vmem:[#allocation2 + $0x8] sm:$0xff]
    %v49 = vld [vmem:[#allocation2 + $0x10] sm:$0xff]
    %v50 = vld [vmem:[#allocation2 + $0x18] sm:$0xff]
    %v51 = vld [vmem:[#allocation5] sm:$0xff]
    %v52 = vld [vmem:[#allocation5 + $0x8] sm:$0xff]
    %v53 = vld [vmem:[#allocation5 + $0x10] sm:$0xff]
    %v54 = vld [vmem:[#allocation5 + $0x18] sm:$0xff]
    %v55 = vld [vmem:[%s2] sm:$0x1]
    %v57 = vperm.slane %v55, 0
    %vm59 = vcmask 261120
    %v61 = vsel %vm59, %v47, 0
    %v64 = vsel %vm59, %v48, 0
    %v67 = vsel %vm59, %v49, 0
    %v70 = vsel %vm59, %v50, 0
    %72 = vmatpush.msra.mxu0 0.0
    %73 = vmatpush.msra.mxu0 0.0
    %74 = vmatpush.msra.mxu0 0.0
    %75 = vmatpush.msra.mxu0 0.0
    %76 = vmatpush.msra.mxu0 0.0
    %77 = vmatpush.msra.mxu0 0.0
    %78 = vmatpush.msra.mxu0 0.0
    %79 = vmatpush.msra.mxu0 0.0
    %80 = vmatpush.msra.mxu0 0.0
    %81 = vmatpush.msra.mxu0 0.0
    %82 = vmatpush.msra.mxu0 0.0
    %83 = vmatpush.msra.mxu0 0.0
    %84 = vmatpush.msra.mxu0 %v54
    %85 = vmatpush.msra.mxu0 %v53
    %86 = vmatpush.msra.mxu0 %v52
    %87 = vmatpush.msra.mxu0 %v51
    %88 = vmatmul.f32.gmra.mxu0 %v61
    %v89 = vpop.f32.mrf.mxu0
    %v90 = vadd.f32 %v57, %v89
    %91 = vmatmul.f32.gmra.mxu0 %v64
    %v92 = vpop.f32.mrf.mxu0
    %v93 = vadd.f32 %v57, %v92
    %94 = vmatmul.f32.gmra.mxu0 %v67
    %v95 = vpop.f32.mrf.mxu0
    %v96 = vadd.f32 %v57, %v95
    %97 = vmatmul.f32.gmra.mxu0 %v70
    %v98 = vpop.f32.mrf.mxu0
    %v99 = vadd.f32 %v57, %v98
    %100 = vdwg.mxu0
    %101 = vst.msk [vmem:[#allocation7] sm:$0xff] %vm59, %v90
    %102 = vst.msk [vmem:[#allocation7 + $0x8] sm:$0xff] %vm59, %v93
    %103 = vst.msk [vmem:[#allocation7 + $0x10] sm:$0xff] %vm59, %v96
    %104 = vst.msk [vmem:[#allocation7 + $0x18] sm:$0xff] %vm59, %v99
    // Predicated region
    $region22: #{tpu_custom_call.1} parent=1 // pred_check
      _
    $region23: #{tpu_custom_call.1} parent=1 // pred_check_branch
      %106 = sbr.rel (0) target = $region25
    $region24: #{tpu_custom_call.1} parent=1 // pred_region
      %108 = vsyncadd [#allocation4], 0
      %s109 = sshll.u32 [#allocation7], 4
      %s110 = int_to_ptr.vmem [resolvable:$true] %s109
      %s111 = sshll.u32 %s3, 4
      %s112 = int_to_ptr.hbm [resolvable:$true] %s111
      %117 = dma.vmem_to_hbm [thread:$0]  %s110, 512, %s112, [#allocation4], 128, 128, 8
    $region25: #{tpu_custom_call.1} parent=1 // pred_fallthru
      _
    // Predicated region
    $region26: #{tpu_custom_call.1} parent=1 // pred_check
      _
    $region27: #{tpu_custom_call.1} parent=1 // pred_check_branch
      %119 = sbr.rel (0) target = $region29
    $region28: #{tpu_custom_call.1} parent=1 // pred_region
      %121 = dma.done [#allocation4], 512
    $region29: #{tpu_custom_call.1} parent=1 // pred_fallthru
      _
    %122 = vsyncpa [#allocation3], 1
    %123 = vsyncpa [#allocation6], 1
    %124 = vsyncpa [#allocation4], 1

</llo_original>
